<compile_context>
chip_gen: v6e
topology: v6e:2x2x1
jax: 0.10.0
libtpu: 0.0.40
codegen_flags: <defaults>
</compile_context>

<pallas_src>
import functools

import jax
import jax.numpy as jnp
from jax import lax
from jax.experimental import pallas as pl
from jax.experimental.pallas import tpu as pltpu


def _round_up(x, m):
    return -(-x // m) * m


@functools.lru_cache(maxsize=None)
def _vmem_capacity_bytes():
    """Per-core VMEM capacity; conservative (v7x) default if the query fails."""
    try:
        cap = int(getattr(pltpu.get_tpu_info(), "vmem_capacity_bytes", 0))
        if cap > 0:
            return cap
    except Exception:
        pass
    return 64 * 1024 * 1024


def _codebook_argmax_kernel(x_ref, w_ref, wb_ref, idx_ref):
    """One tile of rows: argmax_n( x . w_n - 0.5*||w_n||^2 ).

    (Dropping the per-row ||x||^2 term and the factor 2 does not change the
    argmax of the negative L2 distance.)

    x_ref:   (tm, D)    encode rows (MXU dtype, e.g. bf16)
    w_ref:   (N, D)     codebook (MXU dtype, resident)
    wb_ref:  (1, N)     precomputed -0.5*||W||^2 (f32, resident)
    idx_ref: (1, 1, tm) int32 argmax indices (lane-dense)
    """
    score = lax.dot_general(
        x_ref[...], w_ref[...],
        dimension_numbers=(((1,), (1,)), ((), ())),   # contract D: x @ W^T, no transpose
        preferred_element_type=jnp.float32,
    ) + wb_ref[...]                                   # (tm, N) f32
    zidx = jnp.argmax(score, axis=-1).astype(jnp.int32)   # (tm,)
    idx_ref[...] = zidx[None, None, :]                # lane-dense store


@functools.lru_cache(maxsize=None)
def _build_codebook_call(D, N, tm, grid, vmem_limit, single_buffer):
    resident_kwargs = {"pipeline_mode": pl.Buffered(1)} if single_buffer else {}
    return pl.pallas_call(
        _codebook_argmax_kernel,
        out_shape=jax.ShapeDtypeStruct((grid, 1, tm), jnp.int32),
        grid_spec=pltpu.PrefetchScalarGridSpec(
            num_scalar_prefetch=0,
            grid=(grid,),
            in_specs=[
                pl.BlockSpec((tm, D), lambda i: (i, 0)),                      # row tile of encode
                pl.BlockSpec((N, D), lambda i: (0, 0), **resident_kwargs),    # codebook, resident
                pl.BlockSpec((1, N), lambda i: (0, 0), **resident_kwargs),    # -0.5*||W||^2, resident
            ],
            out_specs=pl.BlockSpec((1, 1, tm), lambda i: (i, 0, 0)),          # lane-dense idx
        ),
        compiler_params=pltpu.CompilerParams(
            dimension_semantics=("parallel",),   # megacore shards the row grid
            vmem_limit_bytes=vmem_limit,
        ),
    )


def codebook_forward(encode, weight, *, tm=256):
    """encode: (B, S, D); weight: (N, D).

    Returns (quant, zidx) with quant: (B, S, D) in weight.dtype,
    zidx: (B, S) int32.
    """
    B, S, D = encode.shape
    N, D2 = weight.shape
    assert D == D2
    M = B * S

    # MXU dtype: single-pass bf16 matmul when inputs are f32 (an f32 MXU matmul
    # is decomposed into multiple slow passes on all current generations).
    if jnp.dtype(encode.dtype) == jnp.float32 or jnp.dtype(weight.dtype) == jnp.float32:
        mx_dtype = jnp.bfloat16
    else:
        mx_dtype = jnp.result_type(encode.dtype, weight.dtype)
    mx_bytes = jnp.dtype(mx_dtype).itemsize
    sub = max(8, 32 // mx_bytes)       # sublane multiple for the row tile (16 for bf16)

    # --- row-tile size under a generation-aware VMEM budget ------------------
    cap = _vmem_capacity_bytes()
    # ~100 MiB on 128-MiB chips (v5e/v6e), ~50 MiB on v7x (64 MiB/TC) — leaves
    # headroom for Mosaic internal scratch / semaphores.
    budget = max(min(int(cap * 0.78), cap - 12 * 1024 * 1024), 16 * 1024 * 1024)

    def est(t):   # conservative: assumes double-buffered resident operands
        resident = 2 * (N * D * mx_bytes + N * 4)       # codebook + bias
        io = 2 * t * D * mx_bytes + 2 * t * 4           # x tile + idx tile (dbl-buf)
        tmp = 2 * t * N * 4                             # f32 score + argmax temporaries
        return resident + io + tmp

    tm_eff = min(_round_up(tm, sub), _round_up(M, sub))
    while tm_eff > sub and est(tm_eff) > budget:
        tm_eff = _round_up(max(tm_eff // 2, sub), sub)
    # TODO(synk): if even the smallest row tile blows the budget (huge N*D),
    # switch to the N-tiled streaming variant instead of relying on headroom.

    M_pad = _round_up(M, tm_eff)
    grid = M_pad // tm_eff
    if grid == 1 and M >= 256:
        # Give the "parallel" row grid at least two steps so the megacore
        # (v7x: 2 TensorCores) can shard the work.
        tm_eff = _round_up(-(-M // 2), sub)
        M_pad = _round_up(M, tm_eff)
        grid = M_pad // tm_eff

    vmem_limit = int(min(budget, max(2 * est(tm_eff), 32 * 1024 * 1024)))

    # --- wrapper-side one-time prep (hoisted out of the grid loop) -----------
    x2d = encode.reshape(M, D).astype(mx_dtype)
    if M_pad != M:
        x2d = jnp.pad(x2d, ((0, M_pad - M), (0, 0)))
    w_mx = weight.astype(mx_dtype)                                              # (N, D)
    wbias = (-0.5 * jnp.sum(weight.astype(jnp.float32) ** 2, axis=-1))[None, :]  # (1, N) f32

    def run(single_buffer):
        call = _build_codebook_call(D, N, tm_eff, grid, vmem_limit, single_buffer)
        return call(x2d, w_mx, wbias)

    try:
        idx3d = run(True)        # single-buffered resident codebook / bias
    except Exception:            # pl.Buffered(1) unsupported on this toolchain
        idx3d = run(False)       # fall back to default double buffering

    zidx = idx3d.reshape(M_pad)[:M].reshape(B, S)
    # Exact row select in the weight's own dtype (matches templat.weight[idx]);
    # doing it here (XLA gather) instead of an in-kernel onehot @ W matmul
    # halves the MXU flops and avoids lane-sparse quant stores when D < 128.
    quant = jnp.take(weight, zidx, axis=0)
    return quant, zidx


def _reference_forward(encode, weight):
    """Pure-JAX f32 reference of the PyTorch eval forward (full L2 logits)."""
    enc = encode.astype(jnp.float32)
    w = weight.astype(jnp.float32)
    dist = (
        jnp.sum(enc**2, -1, keepdims=True)
        - 2.0 * jnp.einsum("bsd,nd->bsn", enc, w)
        + jnp.sum(w**2, -1)[None, None, :]
    )
    zidx = jnp.argmax(-dist, axis=-1)
    quant = weight[zidx]
    return quant, zidx


if __name__ == "__main__":
    key = jax.random.PRNGKey(0)
    k_w, k_x = jax.random.split(key)

    num_embed = 64     # n
    embed_dim = 32     # c
    B, S = 2, 8        # encode: (batch, seq, embed_dim)

    # nn.Embedding(num_embed, embed_dim).weight.uniform_(-1/n, 1/n)
    weight = jax.random.uniform(
        k_w, (num_embed, embed_dim), jnp.float32,
        minval=-1.0 / num_embed, maxval=1.0 / num_embed,
    )
    encode = jax.random.normal(k_x, (B, S, embed_dim), jnp.float32)

    quant, zidx = codebook_forward(encode, weight)
    jax.block_until_ready((quant, zidx))

    quant_ref, zidx_ref = _reference_forward(encode, weight)
    assert quant.shape == (B, S, embed_dim) and zidx.shape == (B, S)
    assert quant.dtype == weight.dtype and zidx.dtype == jnp.int32

    # The bf16 score matmul may flip rare near-ties vs the f32 reference:
    # require a high agreement rate, exact quant == W[zidx] consistency, and
    # exact equality with the reference wherever the indices agree.
    match = float(jnp.mean((zidx == zidx_ref).astype(jnp.float32)))
    assert match >= 0.75, f"index agreement too low: {match}"
    assert jnp.array_equal(quant, weight[zidx])
    agree = (zidx == zidx_ref)[..., None]
    assert jnp.allclose(jnp.where(agree, quant, quant_ref), quant_ref, atol=1e-6)

    print("KERNEL_OK")
</pallas_src>

<mosaic_0001>
module attributes {stable_mosaic.version = 11 : i64} {
  func.func @_codebook_argmax_kernel(%arg0: i32, %arg1: memref<16x32xbf16, #tpu.memory_space<vmem>>, %arg2: memref<64x32xbf16, #tpu.memory_space<vmem>>, %arg3: memref<1x64xf32, #tpu.memory_space<vmem>>, %arg4: memref<1x1x16xi32, #tpu.memory_space<vmem>>) attributes {dimension_semantics = [#tpu.dimension_semantics<parallel>], iteration_bounds = array<i64: 1>, scalar_prefetch = 0 : i64, scratch_operands = 0 : i64, tpu.core_type = #tpu.core_type<tc>, window_params = [{transform_indices = @transform_0, window_bounds = array<i64: 16, 32>}, {pipeline_mode = #tpu.pipeline_mode<synchronous>, transform_indices = @transform_1, window_bounds = array<i64: 64, 32>}, {pipeline_mode = #tpu.pipeline_mode<synchronous>, transform_indices = @transform_2, window_bounds = array<i64: 1, 64>}, {transform_indices = @transform_3, window_bounds = array<i64: 1, 1, 16>}]} {
    %c0 = arith.constant 0 : index
    %c0_0 = arith.constant 0 : index
    %0 = vector.load %arg1[%c0, %c0_0] : memref<16x32xbf16, #tpu.memory_space<vmem>>, vector<16x32xbf16>
    %c0_1 = arith.constant 0 : index
    %c0_2 = arith.constant 0 : index
    %1 = vector.load %arg2[%c0_1, %c0_2] : memref<64x32xbf16, #tpu.memory_space<vmem>>, vector<64x32xbf16>
    %cst = arith.constant dense<0.000000e+00> : vector<16x64xf32>
    %2 = tpu.matmul %0, %1, %cst {dimension_numbers = #tpu.dot_dimension_numbers<[1], [1], [0], [0], [0, 0, 1, 0], [], []>} : vector<16x32xbf16>, vector<64x32xbf16>, vector<16x64xf32> -> vector<16x64xf32>
    %c0_3 = arith.constant 0 : index
    %c0_4 = arith.constant 0 : index
    %3 = vector.load %arg3[%c0_3, %c0_4] : memref<1x64xf32, #tpu.memory_space<vmem>>, vector<1x64xf32>
    %4 = vector.broadcast %3 : vector<1x64xf32> to vector<16x64xf32>
    %5 = arith.addf %2, %4 : vector<16x64xf32>
    %6 = tpu.reduce_index %5 {axis = 1 : i32, kind = #tpu.reduction_kind<arg_max>} : vector<16x64xf32> -> vector<16xi32>
    %7 = vector.shape_cast %6 : vector<16xi32> to vector<1x1x16xi32>
    %c0_5 = arith.constant 0 : index
    %c0_6 = arith.constant 0 : index
    %c0_7 = arith.constant 0 : index
    %8 = vector.load %arg4[%c0_5, %c0_6, %c0_7] : memref<1x1x16xi32, #tpu.memory_space<vmem>>, vector<1x1x16xi32>
    tpu.vector_store %arg4[%c0_5, %c0_6, %c0_7], %7 {strides = array<i32>} : memref<1x1x16xi32, #tpu.memory_space<vmem>>, vector<1x1x16xi32>,
    return
  }
  func.func @transform_0(%arg0: i32) -> (i32, i32) {
    %c0_i32 = arith.constant 0 : i32
    %c0_i32_0 = arith.constant 0 : i32
    return %arg0, %c0_i32 : i32, i32
  }
  func.func @transform_1(%arg0: i32) -> (i32, i32) {
    %c0_i32 = arith.constant 0 : i32
    %c0_i32_0 = arith.constant 0 : i32
    %c0_i32_1 = arith.constant 0 : i32
    return %c0_i32, %c0_i32_0 : i32, i32
  }
  func.func @transform_2(%arg0: i32) -> (i32, i32) {
    %c0_i32 = arith.constant 0 : i32
    %c0_i32_0 = arith.constant 0 : i32
    %c0_i32_1 = arith.constant 0 : i32
    return %c0_i32, %c0_i32_0 : i32, i32
  }
  func.func @transform_3(%arg0: i32) -> (i32, i32, i32) {
    %c0_i32 = arith.constant 0 : i32
    %c0_i32_0 = arith.constant 0 : i32
    %c0_i32_1 = arith.constant 0 : i32
    return %arg0, %c0_i32, %c0_i32_0 : i32, i32, i32
  }
}

module attributes {stable_mosaic.version = 11 : i64} {
  func.func @_codebook_argmax_kernel(%arg0: i32, %arg1: memref<16x32xbf16, #tpu.memory_space<vmem>>, %arg2: memref<64x32xbf16, #tpu.memory_space<vmem>>, %arg3: memref<1x64xf32, #tpu.memory_space<vmem>>, %arg4: memref<1x1x16xi32, #tpu.memory_space<vmem>>) attributes {dimension_semantics = [#tpu.dimension_semantics<parallel>], iteration_bounds = array<i64: 1>, scalar_prefetch = 0 : i64, scratch_operands = 0 : i64, tpu.core_type = #tpu.core_type<tc>, window_params = [{transform_indices = @transform_0, window_bounds = array<i64: 16, 32>}, {pipeline_mode = #tpu.pipeline_mode<synchronous>, transform_indices = @transform_1, window_bounds = array<i64: 64, 32>}, {pipeline_mode = #tpu.pipeline_mode<synchronous>, transform_indices = @transform_2, window_bounds = array<i64: 1, 64>}, {transform_indices = @transform_3, window_bounds = array<i64: 1, 1, 16>}]} {
    %c0 = arith.constant 0 : index
    %c0_0 = arith.constant 0 : index
    %0 = vector.load %arg1[%c0, %c0_0] : memref<16x32xbf16, #tpu.memory_space<vmem>>, vector<16x32xbf16>
    %c0_1 = arith.constant 0 : index
    %c0_2 = arith.constant 0 : index
    %1 = vector.load %arg2[%c0_1, %c0_2] : memref<64x32xbf16, #tpu.memory_space<vmem>>, vector<64x32xbf16>
    %cst = arith.constant dense<0.000000e+00> : vector<16x64xf32>
    %2 = tpu.matmul %0, %1, %cst {dimension_numbers = #tpu.dot_dimension_numbers<[1], [1], [0], [0], [0, 0, 1, 0], [], []>} : vector<16x32xbf16>, vector<64x32xbf16>, vector<16x64xf32> -> vector<16x64xf32>
    %c0_3 = arith.constant 0 : index
    %c0_4 = arith.constant 0 : index
    %3 = vector.load %arg3[%c0_3, %c0_4] : memref<1x64xf32, #tpu.memory_space<vmem>>, vector<1x64xf32>
    %4 = vector.broadcast %3 : vector<1x64xf32> to vector<16x64xf32>
    %5 = arith.addf %2, %4 : vector<16x64xf32>
    %6 = tpu.reduce_index %5 {axis = 1 : i32, kind = #tpu.reduction_kind<arg_max>} : vector<16x64xf32> -> vector<16xi32>
    %7 = vector.shape_cast %6 : vector<16xi32> to vector<1x1x16xi32>
    %c0_5 = arith.constant 0 : index
    %c0_6 = arith.constant 0 : index
    %c0_7 = arith.constant 0 : index
    %8 = vector.load %arg4[%c0_5, %c0_6, %c0_7] : memref<1x1x16xi32, #tpu.memory_space<vmem>>, vector<1x1x16xi32>
    tpu.vector_store %arg4[%c0_5, %c0_6, %c0_7], %7 {strides = array<i32>} : memref<1x1x16xi32, #tpu.memory_space<vmem>>, vector<1x1x16xi32>,
    return
  }
  func.func @transform_0(%arg0: i32) -> (i32, i32) {
    %c0_i32 = arith.constant 0 : i32
    %c0_i32_0 = arith.constant 0 : i32
    return %arg0, %c0_i32 : i32, i32
  }
  func.func @transform_1(%arg0: i32) -> (i32, i32) {
    %c0_i32 = arith.constant 0 : i32
    %c0_i32_0 = arith.constant 0 : i32
    %c0_i32_1 = arith.constant 0 : i32
    return %c0_i32, %c0_i32_0 : i32, i32
  }
  func.func @transform_2(%arg0: i32) -> (i32, i32) {
    %c0_i32 = arith.constant 0 : i32
    %c0_i32_0 = arith.constant 0 : i32
    %c0_i32_1 = arith.constant 0 : i32
    return %c0_i32, %c0_i32_0 : i32, i32
  }
  func.func @transform_3(%arg0: i32) -> (i32, i32, i32) {
    %c0_i32 = arith.constant 0 : i32
    %c0_i32_0 = arith.constant 0 : i32
    %c0_i32_1 = arith.constant 0 : i32
    return %arg0, %c0_i32, %c0_i32_0 : i32, i32, i32
  }
}

</mosaic_0001>

<llo_original>
// kernel: tpu_custom_call.1
$region0: #{tpu_custom_call.1}
  #allocation0 [shape = 'u32[]', space=smem, size = 0x4, offset = 0x4, fixed_abs, tag = 'smem constant byte address 0x4 - core index']
  #allocation1 [shape = 'u32[144,128]{1,0:T(1,128)}', space=vmem, size = 0x12000, scoped, tag = 'internal scratch']
  %s0 = inlined_call_operand.vmem [shape: bf16[16,32], index: 0, kind: input, shape index: {}]
  %s1 = inlined_call_operand.vmem [shape: bf16[64,32], index: 1, kind: input, shape index: {}]
  %s2 = inlined_call_operand.vmem [shape: f32[1,64], index: 2, kind: input, shape index: {}]
  %s3 = inlined_call_operand.hbm [shape: s32[1,1,16], index: 3, kind: output, shape index: {}]
  %s4 = sld [smem:[#allocation0]]
  $region22: #{tpu_custom_call.1} parent=0
    _
  %s6 = ssub.s32 1, %s4
  %s7 = scalar_select 0, %s6, %s4
  $region1: #{tpu_custom_call.1} parent=0
    #allocation2 [shape = 'u8[512]{0}', space=vmem, size = 0x400, scoped, tag = 'output window, operand 0, single buffered']
    #allocation3 [shape = 's32[1]{0}', space=sflag, size = 0x4, scoped, tag = 'scoped memory for tpu_custom_call.1']
    %8 = vsyncpa [#allocation3], 0
    // Predicated region
    $region2: #{tpu_custom_call.1} parent=1 // pred_check
      _
    $region3: #{tpu_custom_call.1} parent=1 // pred_check_branch
      %10 = sbr.rel (0) target = $region5
    $region4: #{tpu_custom_call.1} parent=1 // pred_region
      _
    $region5: #{tpu_custom_call.1} parent=1 // pred_fallthru
      _
    // Predicated region
    $region6: #{tpu_custom_call.1} parent=1 // pred_check
      _
    $region7: #{tpu_custom_call.1} parent=1 // pred_check_branch
      %12 = sbr.rel (0) target = $region9
    $region8: #{tpu_custom_call.1} parent=1 // pred_region
      _
    $region9: #{tpu_custom_call.1} parent=1 // pred_fallthru
      _
    // Predicated region
    $region10: #{tpu_custom_call.1} parent=1 // pred_check
      _
    $region11: #{tpu_custom_call.1} parent=1 // pred_check_branch
      %14 = sbr.rel (0) target = $region13
    $region12: #{tpu_custom_call.1} parent=1 // pred_region
      _
    $region13: #{tpu_custom_call.1} parent=1 // pred_fallthru
      _
    %v16 = vld [vmem:[%s0] sm:$0xf]
    %v17 = vld [vmem:[%s0 + $0x4] sm:$0xf]
    %v18 = vld [vmem:[%s1] sm:$0xf]
    %v19 = vld [vmem:[%s1 + $0x4] sm:$0xf]
    %v20 = vld [vmem:[%s1 + $0x8] sm:$0xf]
    %v21 = vld [vmem:[%s1 + $0xc] sm:$0xf]
    %v22 = vld [vmem:[%s1 + $0x10] sm:$0xf]
    %v23 = vld [vmem:[%s1 + $0x14] sm:$0xf]
    %v24 = vld [vmem:[%s1 + $0x18] sm:$0xf]
    %v25 = vld [vmem:[%s1 + $0x1c] sm:$0xf]
    %v26 = vld [vmem:[%s2] sm:$0x1]
    %v28 = vlaneseq
    %v29 = vshrl.u32 %v28, 7
    %v30 = vsub.s32 0, %v29
    %v31 = vrot.slane %v26, %v30
    %v35 = vunpack.c.l.b16 %v16
    %v36 = vunpack.c.l.b16 %v17
    %v37 = vpack.c.b16 %v36, %v35
    %v46 = vunpack.c.l.b16 %v18
    %v47 = vunpack.c.l.b16 %v19
    %v48 = vunpack.c.l.b16 %v20
    %v49 = vunpack.c.l.b16 %v21
    %v50 = vunpack.c.l.b16 %v22
    %v51 = vunpack.c.l.b16 %v23
    %v52 = vunpack.c.l.b16 %v24
    %v53 = vunpack.c.l.b16 %v25
    %v54 = vpack.c.b16 %v47, %v46
    %v55 = vpack.c.b16 %v49, %v48
    %v56 = vpack.c.b16 %v51, %v50
    %v57 = vpack.c.b16 %v53, %v52
    %vm58 = vcmask 261120
    %v60 = vsel %vm58, %v37, 0
    %v63 = vsel %vm58, %v54, 0
    %v66 = vsel %vm58, %v55, 0
    %v69 = vsel %vm58, %v56, 0
    %v72 = vsel %vm58, %v57, 0
    %74 = vmatprep.subr.bf16.mxu0 0
    %75 = vmatpush1.bf16.xpose.msra.mxu0 0
    %76 = vmatprep.subr.bf16.mxu0 0
    %77 = vmatpush1.bf16.xpose.msra.mxu0 0
    %78 = vmatprep.subr.bf16.mxu0 0
    %79 = vmatpush1.bf16.xpose.msra.mxu0 0
    %80 = vmatprep.subr.bf16.mxu0 0
    %81 = vmatpush1.bf16.xpose.msra.mxu0 0
    %82 = vmatprep.subr.bf16.mxu0 0
    %83 = vmatpush1.bf16.xpose.msra.mxu0 %v72
    %84 = vmatprep.subr.bf16.mxu0 0
    %85 = vmatpush1.bf16.xpose.msra.mxu0 %v69
    %86 = vmatprep.subr.bf16.mxu0 0
    %87 = vmatpush1.bf16.xpose.msra.mxu0 %v66
    %88 = vmatprep.subr.bf16.mxu0 0
    %89 = vmatpush1.bf16.xpose.msra.mxu0 %v63
    %90 = vmatprep.subr.bf16.mxu0 0
    %91 = vmatpush2.bf16.xpose.msra.mxu0 0
    %92 = vmatprep.subr.bf16.mxu0 0
    %93 = vmatpush2.bf16.xpose.msra.mxu0 0
    %94 = vmatprep.subr.bf16.mxu0 0
    %95 = vmatpush2.bf16.xpose.msra.mxu0 0
    %96 = vmatprep.subr.bf16.mxu0 0
    %97 = vmatpush2.bf16.xpose.msra.mxu0 0
    %98 = vmatprep.subr.bf16.mxu0 0
    %99 = vmatpush2.bf16.xpose.msra.mxu0 0
    %100 = vmatprep.subr.bf16.mxu0 0
    %101 = vmatpush2.bf16.xpose.msra.mxu0 0
    %102 = vmatprep.subr.bf16.mxu0 0
    %103 = vmatpush2.bf16.xpose.msra.mxu0 0
    %104 = vmatprep.subr.bf16.mxu0 0
    %105 = vmatpush2.bf16.xpose.msra.mxu0 0
    %106 = vmatprep.mubr.bf16.mxu0 0
    %107 = vmatmul.mubr.bf16.gmra.mxu0 %v60
    %v108 = vpop.f32.mrf.mxu0
    %v109 = vadd.f32 %v31, %v108
    %v110 = vpop.f32.mrf.mxu0
    %v111 = vpop.f32.mrf.mxu0
    %v112 = vadd.f32 %v31, %v111
    %v113 = vpop.f32.mrf.mxu0
    %114 = vdwg.mxu0
    %vm115 = vcmask 523264
    %v116 = vsel %vm115, %v109, -inf
    %117 = vmax.index.xlane.f32.xlu0 %v116
    %v118 = vpop.xlane.xlu0 %117
    %v119 = vsel %vm115, %v112, -inf
    %120 = vmax.index.xlane.f32.xlu0 %v119
    %v121 = vpop.xlane.xlu0 %120
    %v122 = vlaneseq
    %v123 = vand.u32 %v122, 127
    %v124 = vlaneseq
    %v125 = vshrl.u32 %v124, 7
    %v126 = vsub.s32 %v123, %v125
    %v127 = vrot.slane %v118, %v126
    %v128 = vadd.s32 %v123, 4294967288
    %v129 = vlaneseq
    %v130 = vshrl.u32 %v129, 7
    %v131 = vsub.s32 %v128, %v130
    %v132 = vrot.slane %v121, %v131
    %vm133 = vcmask 130112
    %v134 = vsel %vm133, %v132, %v127
    %vm135 = vcmask 122880
    %136 = vst.msk [vmem:[#allocation2] sm:$0x1] %vm135, %v134
    // Predicated region
    $region14: #{tpu_custom_call.1} parent=1 // pred_check
      _
    $region15: #{tpu_custom_call.1} parent=1 // pred_check_branch
      %138 = sbr.rel (0) target = $region17
    $region16: #{tpu_custom_call.1} parent=1 // pred_region
      %s140 = ssub.s32 16, 16
      %141 = vsyncadd [#allocation3], %s140
      %s143 = sshll.u32 [#allocation2], 4
      %s144 = int_to_ptr.vmem [resolvable:$true] %s143
      %146 = dma.vmem_to_hbm [thread:$0]  %s144, 16, %s3, [#allocation3]
    $region17: #{tpu_custom_call.1} parent=1 // pred_fallthru
      _
    // Predicated region
    $region18: #{tpu_custom_call.1} parent=1 // pred_check
      _
    $region19: #{tpu_custom_call.1} parent=1 // pred_check_branch
      %148 = sbr.rel (0) target = $region21
    $region20: #{tpu_custom_call.1} parent=1 // pred_region
      %149 = dma.done [#allocation3], 16
    $region21: #{tpu_custom_call.1} parent=1 // pred_fallthru
      _
    %150 = vsyncpa [#allocation3], 1

// kernel: tpu_custom_call.1
$region0: #{tpu_custom_call.1}
  #allocation0 [shape = 'u32[]', space=smem, size = 0x4, offset = 0x4, fixed_abs, tag = 'smem constant byte address 0x4 - core index']
  #allocation1 [shape = 'u32[144,128]{1,0:T(1,128)}', space=vmem, size = 0x12000, scoped, tag = 'internal scratch']
  %s0 = inlined_call_operand.vmem [shape: bf16[16,32], index: 0, kind: input, shape index: {}]
  %s1 = inlined_call_operand.vmem [shape: bf16[64,32], index: 1, kind: input, shape index: {}]
  %s2 = inlined_call_operand.vmem [shape: f32[1,64], index: 2, kind: input, shape index: {}]
  %s3 = inlined_call_operand.hbm [shape: s32[1,1,16], index: 3, kind: output, shape index: {}]
  %s4 = sld [smem:[#allocation0]]
  $region22: #{tpu_custom_call.1} parent=0
    _
  %s6 = ssub.s32 1, %s4
  %s7 = scalar_select 0, %s6, %s4
  $region1: #{tpu_custom_call.1} parent=0
    #allocation2 [shape = 'u8[512]{0}', space=vmem, size = 0x400, scoped, tag = 'output window, operand 0, single buffered']
    #allocation3 [shape = 's32[1]{0}', space=sflag, size = 0x4, scoped, tag = 'scoped memory for tpu_custom_call.1']
    %8 = vsyncpa [#allocation3], 0
    // Predicated region
    $region2: #{tpu_custom_call.1} parent=1 // pred_check
      _
    $region3: #{tpu_custom_call.1} parent=1 // pred_check_branch
      %10 = sbr.rel (0) target = $region5
    $region4: #{tpu_custom_call.1} parent=1 // pred_region
      _
    $region5: #{tpu_custom_call.1} parent=1 // pred_fallthru
      _
    // Predicated region
    $region6: #{tpu_custom_call.1} parent=1 // pred_check
      _
    $region7: #{tpu_custom_call.1} parent=1 // pred_check_branch
      %12 = sbr.rel (0) target = $region9
    $region8: #{tpu_custom_call.1} parent=1 // pred_region
      _
    $region9: #{tpu_custom_call.1} parent=1 // pred_fallthru
      _
    // Predicated region
    $region10: #{tpu_custom_call.1} parent=1 // pred_check
      _
    $region11: #{tpu_custom_call.1} parent=1 // pred_check_branch
      %14 = sbr.rel (0) target = $region13
    $region12: #{tpu_custom_call.1} parent=1 // pred_region
      _
    $region13: #{tpu_custom_call.1} parent=1 // pred_fallthru
      _
    %v16 = vld [vmem:[%s0] sm:$0xf]
    %v17 = vld [vmem:[%s0 + $0x4] sm:$0xf]
    %v18 = vld [vmem:[%s1] sm:$0xf]
    %v19 = vld [vmem:[%s1 + $0x4] sm:$0xf]
    %v20 = vld [vmem:[%s1 + $0x8] sm:$0xf]
    %v21 = vld [vmem:[%s1 + $0xc] sm:$0xf]
    %v22 = vld [vmem:[%s1 + $0x10] sm:$0xf]
    %v23 = vld [vmem:[%s1 + $0x14] sm:$0xf]
    %v24 = vld [vmem:[%s1 + $0x18] sm:$0xf]
    %v25 = vld [vmem:[%s1 + $0x1c] sm:$0xf]
    %v26 = vld [vmem:[%s2] sm:$0x1]
    %v28 = vlaneseq
    %v29 = vshrl.u32 %v28, 7
    %v30 = vsub.s32 0, %v29
    %v31 = vrot.slane %v26, %v30
    %v35 = vunpack.c.l.b16 %v16
    %v36 = vunpack.c.l.b16 %v17
    %v37 = vpack.c.b16 %v36, %v35
    %v46 = vunpack.c.l.b16 %v18
    %v47 = vunpack.c.l.b16 %v19
    %v48 = vunpack.c.l.b16 %v20
    %v49 = vunpack.c.l.b16 %v21
    %v50 = vunpack.c.l.b16 %v22
    %v51 = vunpack.c.l.b16 %v23
    %v52 = vunpack.c.l.b16 %v24
    %v53 = vunpack.c.l.b16 %v25
    %v54 = vpack.c.b16 %v47, %v46
    %v55 = vpack.c.b16 %v49, %v48
    %v56 = vpack.c.b16 %v51, %v50
    %v57 = vpack.c.b16 %v53, %v52
    %vm58 = vcmask 261120
    %v60 = vsel %vm58, %v37, 0
    %v63 = vsel %vm58, %v54, 0
    %v66 = vsel %vm58, %v55, 0
    %v69 = vsel %vm58, %v56, 0
    %v72 = vsel %vm58, %v57, 0
    %74 = vmatprep.subr.bf16.mxu0 0
    %75 = vmatpush1.bf16.xpose.msra.mxu0 0
    %76 = vmatprep.subr.bf16.mxu0 0
    %77 = vmatpush1.bf16.xpose.msra.mxu0 0
    %78 = vmatprep.subr.bf16.mxu0 0
    %79 = vmatpush1.bf16.xpose.msra.mxu0 0
    %80 = vmatprep.subr.bf16.mxu0 0
    %81 = vmatpush1.bf16.xpose.msra.mxu0 0
    %82 = vmatprep.subr.bf16.mxu0 0
    %83 = vmatpush1.bf16.xpose.msra.mxu0 %v72
    %84 = vmatprep.subr.bf16.mxu0 0
    %85 = vmatpush1.bf16.xpose.msra.mxu0 %v69
    %86 = vmatprep.subr.bf16.mxu0 0
    %87 = vmatpush1.bf16.xpose.msra.mxu0 %v66
    %88 = vmatprep.subr.bf16.mxu0 0
    %89 = vmatpush1.bf16.xpose.msra.mxu0 %v63
    %90 = vmatprep.subr.bf16.mxu0 0
    %91 = vmatpush2.bf16.xpose.msra.mxu0 0
    %92 = vmatprep.subr.bf16.mxu0 0
    %93 = vmatpush2.bf16.xpose.msra.mxu0 0
    %94 = vmatprep.subr.bf16.mxu0 0
    %95 = vmatpush2.bf16.xpose.msra.mxu0 0
    %96 = vmatprep.subr.bf16.mxu0 0
    %97 = vmatpush2.bf16.xpose.msra.mxu0 0
    %98 = vmatprep.subr.bf16.mxu0 0
    %99 = vmatpush2.bf16.xpose.msra.mxu0 0
    %100 = vmatprep.subr.bf16.mxu0 0
    %101 = vmatpush2.bf16.xpose.msra.mxu0 0
    %102 = vmatprep.subr.bf16.mxu0 0
    %103 = vmatpush2.bf16.xpose.msra.mxu0 0
    %104 = vmatprep.subr.bf16.mxu0 0
    %105 = vmatpush2.bf16.xpose.msra.mxu0 0
    %106 = vmatprep.mubr.bf16.mxu0 0
    %107 = vmatmul.mubr.bf16.gmra.mxu0 %v60
    %v108 = vpop.f32.mrf.mxu0
    %v109 = vadd.f32 %v31, %v108
    %v110 = vpop.f32.mrf.mxu0
    %v111 = vpop.f32.mrf.mxu0
    %v112 = vadd.f32 %v31, %v111
    %v113 = vpop.f32.mrf.mxu0
    %114 = vdwg.mxu0
    %vm115 = vcmask 523264
    %v116 = vsel %vm115, %v109, -inf
    %117 = vmax.index.xlane.f32.xlu0 %v116
    %v118 = vpop.xlane.xlu0 %117
    %v119 = vsel %vm115, %v112, -inf
    %120 = vmax.index.xlane.f32.xlu0 %v119
    %v121 = vpop.xlane.xlu0 %120
    %v122 = vlaneseq
    %v123 = vand.u32 %v122, 127
    %v124 = vlaneseq
    %v125 = vshrl.u32 %v124, 7
    %v126 = vsub.s32 %v123, %v125
    %v127 = vrot.slane %v118, %v126
    %v128 = vadd.s32 %v123, 4294967288
    %v129 = vlaneseq
    %v130 = vshrl.u32 %v129, 7
    %v131 = vsub.s32 %v128, %v130
    %v132 = vrot.slane %v121, %v131
    %vm133 = vcmask 130112
    %v134 = vsel %vm133, %v132, %v127
    %vm135 = vcmask 122880
    %136 = vst.msk [vmem:[#allocation2] sm:$0x1] %vm135, %v134
    // Predicated region
    $region14: #{tpu_custom_call.1} parent=1 // pred_check
      _
    $region15: #{tpu_custom_call.1} parent=1 // pred_check_branch
      %138 = sbr.rel (0) target = $region17
    $region16: #{tpu_custom_call.1} parent=1 // pred_region
      %s140 = ssub.s32 16, 16
      %141 = vsyncadd [#allocation3], %s140
      %s143 = sshll.u32 [#allocation2], 4
      %s144 = int_to_ptr.vmem [resolvable:$true] %s143
      %146 = dma.vmem_to_hbm [thread:$0]  %s144, 16, %s3, [#allocation3]
    $region17: #{tpu_custom_call.1} parent=1 // pred_fallthru
      _
    // Predicated region
    $region18: #{tpu_custom_call.1} parent=1 // pred_check
      _
    $region19: #{tpu_custom_call.1} parent=1 // pred_check_branch
      %148 = sbr.rel (0) target = $region21
    $region20: #{tpu_custom_call.1} parent=1 // pred_region
      %149 = dma.done [#allocation3], 16
    $region21: #{tpu_custom_call.1} parent=1 // pred_fallthru
      _
    %150 = vsyncpa [#allocation3], 1

</llo_original>
